<compile_context>
chip_gen: v7x
topology: tpu7x:2x2x1
jax: 0.10.0
libtpu: 0.0.40
codegen_flags: <defaults>
</compile_context>

<pallas_src>
import functools
import math

import jax
import jax.numpy as jnp
from jax.experimental import pallas as pl
from jax.experimental.pallas import tpu as pltpu

_LOG_2PI = math.log(2.0 * math.pi)
_LOG_2 = math.log(2.0)


def _round_up(x, m):
    return ((x + m - 1) // m) * m


# ----------------------------- Pallas kernel --------------------------------


def _stoch_actor_kernel(
    x_ref,            # (TB, D_in)        bf16 observations (batch tile)
    w1_ref, b1_ref,   # (D_in, H1) bf16 , (1, H1)      f32
    w2_ref, b2_ref,   # (H1, H2)   bf16 , (1, H2)      f32
    wh_ref, bh_ref,   # (H2, 2*128) bf16, (1, 2*128)   f32  fused [mu | log_sigma] head
    *rest,            # [noise_ref (TB, O) f32 if not greedy], act_ref (TB, O),
                      # [logp_ref (TB, 1) if need_logp]
    greedy: bool,
    need_logp: bool,
    o_dim: int,
    ls_off: int,
):
    idx = 0
    noise_ref = None
    if not greedy:
        noise_ref = rest[idx]
        idx += 1
    act_ref = rest[idx]
    idx += 1
    logp_ref = rest[idx] if need_logp else None

    # --- MLP trunk: Linear + ReLU, Linear + ReLU (bf16 dots, f32 accum) -------
    h = jnp.dot(x_ref[...], w1_ref[...],
                preferred_element_type=jnp.float32) + b1_ref[...]
    h = jnp.maximum(h, 0.0)
    h = jnp.dot(h.astype(jnp.bfloat16), w2_ref[...],
                preferred_element_type=jnp.float32) + b2_ref[...]
    h = jnp.maximum(h, 0.0)

    # --- fused heads: one matmul, vreg-aligned slices, narrow O-lane math -----
    head = jnp.dot(h.astype(jnp.bfloat16), wh_ref[...],
                   preferred_element_type=jnp.float32) + bh_ref[...]
    mu = head[:, :o_dim]                                       # (TB, O)
    log_sigma = jnp.clip(head[:, ls_off:ls_off + o_dim], -20.0, 2.0)

    # --- reparameterized sample (or greedy mean) ------------------------------
    if greedy:
        z = None
        act = mu
    else:
        sigma = jnp.exp(log_sigma)
        z = noise_ref[...]                                     # N(0,1), (TB, O)
        act = mu + sigma * z

    act_ref[...] = jnp.tanh(act)

    # --- Normal log_prob + tanh correction (only when logp is consumed) -------
    if need_logp:
        if greedy:
            log_prob = -log_sigma - 0.5 * _LOG_2PI             # z == 0
        else:
            log_prob = -0.5 * z * z - log_sigma - 0.5 * _LOG_2PI
        corr = 2.0 * (_LOG_2 - act - jnp.logaddexp(0.0, -2.0 * act))
        logp_ref[...] = jnp.sum(log_prob - corr, axis=-1, keepdims=True)


# ------------------------------ wrapper --------------------------------------


def pack_params(params, output_dim):
    """One-time parameter prep: fuse + lane-pad the heads, cast weights to bf16.

    The fused head weight has 2*OPAD columns (OPAD = round_up(O, 128)): mu in
    columns [0, O) and log_sigma in columns [OPAD, OPAD+O) so both in-kernel
    slices start at vreg-aligned lane offsets.
    """
    w1, b1, w2, b2, wmu, bmu, ws, bs = params
    h2 = w2.shape[1]
    opad = _round_up(output_dim, 128)
    ls_off = opad

    wh = jnp.zeros((h2, 2 * opad), jnp.float32)
    wh = wh.at[:, :output_dim].set(wmu).at[:, ls_off:ls_off + output_dim].set(ws)
    bh = jnp.zeros((1, 2 * opad), jnp.float32)
    bh = bh.at[:, :output_dim].set(bmu).at[:, ls_off:ls_off + output_dim].set(bs)

    return (
        w1.astype(jnp.bfloat16), b1.astype(jnp.float32),
        w2.astype(jnp.bfloat16), b2.astype(jnp.float32),
        wh.astype(jnp.bfloat16), bh.astype(jnp.float32),
        int(output_dim), int(ls_off),
    )


def _choose_tb(batch):
    """Batch tile: multiple of 16 (bf16 sublane packing); >=2 grid steps when the
    batch allows (so v7x's two TensorCores both get a tile via the 'parallel'
    axis); cap at 1024 rows to amortize the ~0.35us/step overhead (per-tile VMEM
    is tiny relative to any generation's budget)."""
    pb16 = _round_up(max(batch, 1), 16)
    if pb16 < 32:
        return pb16
    return min(_round_up(pb16 // 2, 16), 1024)


def stoch_actor_forward(packed_params, observation, noise=None, *,
                        greedy=False, sample=True):
    """Pallas-backed forward of StochActor (continuous / discrete=False).

    Returns tanh(act) if sample=True, else (tanh(act), logp_pi).
    `noise` is precomputed N(0,1) of shape (B, O); ignored / not required when
    greedy=True.
    """
    w1b, b1, w2b, b2, whb, bh, o_dim, ls_off = packed_params
    B, d_in = observation.shape
    need_logp = not sample

    TB = _choose_tb(B)
    PB = _round_up(B, TB)

    x = observation.astype(jnp.bfloat16)
    if PB != B:
        x = jnp.pad(x, ((0, PB - B), (0, 0)))

    operands = [x, w1b, b1, w2b, b2, whb, bh]
    in_specs = [
        pl.BlockSpec((TB, d_in), lambda i: (i, 0)),   # obs: batch-tiled
        pl.BlockSpec(w1b.shape, lambda i: (0, 0)),    # weights/biases: resident
        pl.BlockSpec(b1.shape, lambda i: (0, 0)),     # (constant index maps ->
        pl.BlockSpec(w2b.shape, lambda i: (0, 0)),    #  no re-DMA per step)
        pl.BlockSpec(b2.shape, lambda i: (0, 0)),
        pl.BlockSpec(whb.shape, lambda i: (0, 0)),
        pl.BlockSpec(bh.shape, lambda i: (0, 0)),
    ]

    if not greedy:
        assert noise is not None, "noise required when greedy=False"
        nz = noise.astype(jnp.float32)
        if PB != B:
            nz = jnp.pad(nz, ((0, PB - B), (0, 0)))
        operands.append(nz)
        # natural (TB, O) width: last dim == full array dim, minimal HBM traffic
        in_specs.append(pl.BlockSpec((TB, o_dim), lambda i: (i, 0)))
        # TODO(synk): optionally generate noise in-kernel (pltpu.prng_* + Box-
        # Muller) to remove this input entirely; kept external for exact
        # verification against the reference.

    if need_logp:
        out_shape = (jax.ShapeDtypeStruct((PB, o_dim), jnp.float32),
                     jax.ShapeDtypeStruct((PB, 1), jnp.float32))
        out_specs = (pl.BlockSpec((TB, o_dim), lambda i: (i, 0)),
                     pl.BlockSpec((TB, 1), lambda i: (i, 0)))
    else:
        out_shape = jax.ShapeDtypeStruct((PB, o_dim), jnp.float32)
        out_specs = pl.BlockSpec((TB, o_dim), lambda i: (i, 0))

    kernel = functools.partial(_stoch_actor_kernel, greedy=greedy,
                               need_logp=need_logp, o_dim=o_dim, ls_off=ls_off)

    out = pl.pallas_call(
        kernel,
        grid=(PB // TB,),
        in_specs=in_specs,
        out_specs=out_specs,
        out_shape=out_shape,
        compiler_params=pltpu.CompilerParams(
            dimension_semantics=("parallel",),
        ),
    )(*operands)

    if need_logp:
        act_p, logp_p = out
        return act_p[:B], logp_p[:B, 0]
    return out[:B]


# ----------------------- deterministic parameter init ------------------------


def init_params(key, input_dim, hidden_dims, output_dim):
    """PyTorch-Linear-style uniform(-1/sqrt(fan_in), 1/sqrt(fan_in)) init.

    Weights are stored as (in_features, out_features) — see layout comment.
    """
    dims = [input_dim] + list(hidden_dims)
    params = []
    keys = jax.random.split(key, 2 * (len(dims) - 1) + 4)
    ki = 0

    def linear(kw, kb, fan_in, fan_out):
        bound = 1.0 / jnp.sqrt(fan_in)
        w = jax.random.uniform(kw, (fan_in, fan_out), jnp.float32, -bound, bound)
        b = jax.random.uniform(kb, (1, fan_out), jnp.float32, -bound, bound)
        return w, b

    for i in range(len(dims) - 1):
        w, b = linear(keys[ki], keys[ki + 1], dims[i], dims[i + 1])
        ki += 2
        params += [w, b]

    wmu, bmu = linear(keys[ki], keys[ki + 1], dims[-1], output_dim)
    ws, bs = linear(keys[ki + 2], keys[ki + 3], dims[-1], output_dim)
    params += [wmu, bmu, ws, bs]
    return tuple(params)


# ------------------------------ reference ------------------------------------


def _reference_forward(params, x, noise, *, greedy=False):
    """Plain-JAX reference with the same bf16-matmul / f32-accumulate recipe."""
    w1, b1, w2, b2, wmu, bmu, ws, bs = params
    xb = x.astype(jnp.bfloat16)
    h = jnp.maximum(jnp.dot(xb, w1.astype(jnp.bfloat16),
                            preferred_element_type=jnp.float32) + b1, 0.0)
    h = jnp.maximum(jnp.dot(h.astype(jnp.bfloat16), w2.astype(jnp.bfloat16),
                            preferred_element_type=jnp.float32) + b2, 0.0)
    hb = h.astype(jnp.bfloat16)
    mu = jnp.dot(hb, wmu.astype(jnp.bfloat16),
                 preferred_element_type=jnp.float32) + bmu
    log_sigma = jnp.clip(jnp.dot(hb, ws.astype(jnp.bfloat16),
                                 preferred_element_type=jnp.float32) + bs,
                         -20.0, 2.0)
    sigma = jnp.exp(log_sigma)
    z = jnp.zeros_like(noise) if greedy else noise
    act = mu + sigma * z
    logp = jnp.sum(-0.5 * z * z - log_sigma - 0.5 * _LOG_2PI, axis=-1)
    logp -= jnp.sum(2.0 * (_LOG_2 - act - jnp.logaddexp(0.0, -2.0 * act)), axis=-1)
    return jnp.tanh(act), logp


# TODO(synk): discrete=True branch (Gumbel-softmax over logits) not implemented;
# this kernel covers the continuous-action path of StochActor.forward.


if __name__ == "__main__":
    # Small shapes implied by the module: obs_dim=32, hidden_dims=[64, 64],
    # action_dim=8, batch=4.
    B, D_IN, H, O = 4, 32, 64, 8

    key = jax.random.PRNGKey(0)
    kp, kx, kn = jax.random.split(key, 3)

    params = init_params(kp, D_IN, [H, H], O)
    packed = pack_params(params, O)
    obs = jax.random.normal(kx, (B, D_IN), dtype=jnp.float32)
    noise = jax.random.normal(kn, (B, O), dtype=jnp.float32)  # N(0,1) for rsample

    # sample=True path (returns tanh(act) only; logp never computed)
    act = jax.block_until_ready(
        stoch_actor_forward(packed, obs, noise, greedy=False, sample=True))

    # sample=False path (returns (tanh(act), logp_pi))
    act2, logp = jax.block_until_ready(
        stoch_actor_forward(packed, obs, noise, greedy=False, sample=False))

    # greedy paths (no noise operand built or DMA'd at all)
    act_g, logp_g = jax.block_until_ready(
        stoch_actor_forward(packed, obs, greedy=True, sample=False))
    act_g2 = jax.block_until_ready(
        stoch_actor_forward(packed, obs, greedy=True, sample=True))

    # numerical check vs. plain-JAX reference (same bf16 matmul recipe)
    ref_act, ref_logp = _reference_forward(params, obs, noise, greedy=False)
    ref_act_g, ref_logp_g = _reference_forward(params, obs, noise, greedy=True)
    assert jnp.allclose(act, ref_act, atol=1e-3), "act mismatch"
    assert jnp.allclose(act2, ref_act, atol=1e-3), "act (sample=False) mismatch"
    assert jnp.allclose(logp, ref_logp, atol=1e-2, rtol=1e-3), "logp mismatch"
    assert jnp.allclose(act_g, ref_act_g, atol=1e-3), "greedy act mismatch"
    assert jnp.allclose(act_g2, ref_act_g, atol=1e-3), "greedy act (sample=True) mismatch"
    assert jnp.allclose(logp_g, ref_logp_g, atol=1e-2, rtol=1e-3), "greedy logp mismatch"

    print("KERNEL_OK")
</pallas_src>

<mosaic_0001>
module attributes {stable_mosaic.version = 11 : i64} {
  func.func @_stoch_actor_kernel(%arg0: i32, %arg1: memref<16x32xbf16, #tpu.memory_space<vmem>>, %arg2: memref<32x64xbf16, #tpu.memory_space<vmem>>, %arg3: memref<1x64xf32, #tpu.memory_space<vmem>>, %arg4: memref<64x64xbf16, #tpu.memory_space<vmem>>, %arg5: memref<1x64xf32, #tpu.memory_space<vmem>>, %arg6: memref<64x256xbf16, #tpu.memory_space<vmem>>, %arg7: memref<1x256xf32, #tpu.memory_space<vmem>>, %arg8: memref<16x8xf32, #tpu.memory_space<vmem>>, %arg9: memref<16x8xf32, #tpu.memory_space<vmem>>) attributes {dimension_semantics = [#tpu.dimension_semantics<parallel>], iteration_bounds = array<i64: 1>, scalar_prefetch = 0 : i64, scratch_operands = 0 : i64, tpu.core_type = #tpu.core_type<tc>, window_params = [{transform_indices = @transform_0, window_bounds = array<i64: 16, 32>}, {pipeline_mode = #tpu.pipeline_mode<synchronous>, transform_indices = @transform_1, window_bounds = array<i64: 32, 64>}, {pipeline_mode = #tpu.pipeline_mode<synchronous>, transform_indices = @transform_2, window_bounds = array<i64: 1, 64>}, {pipeline_mode = #tpu.pipeline_mode<synchronous>, transform_indices = @transform_3, window_bounds = array<i64: 64, 64>}, {pipeline_mode = #tpu.pipeline_mode<synchronous>, transform_indices = @transform_4, window_bounds = array<i64: 1, 64>}, {pipeline_mode = #tpu.pipeline_mode<synchronous>, transform_indices = @transform_5, window_bounds = array<i64: 64, 256>}, {pipeline_mode = #tpu.pipeline_mode<synchronous>, transform_indices = @transform_6, window_bounds = array<i64: 1, 256>}, {transform_indices = @transform_7, window_bounds = array<i64: 16, 8>}, {transform_indices = @transform_8, window_bounds = array<i64: 16, 8>}]} {
    %c0 = arith.constant 0 : index
    %c0_0 = arith.constant 0 : index
    %0 = vector.load %arg1[%c0, %c0_0] : memref<16x32xbf16, #tpu.memory_space<vmem>>, vector<16x32xbf16>
    %c0_1 = arith.constant 0 : index
    %c0_2 = arith.constant 0 : index
    %1 = vector.load %arg2[%c0_1, %c0_2] : memref<32x64xbf16, #tpu.memory_space<vmem>>, vector<32x64xbf16>
    %cst = arith.constant dense<0.000000e+00> : vector<16x64xf32>
    %2 = tpu.matmul %0, %1, %cst {dimension_numbers = #tpu.dot_dimension_numbers<[1], [0], [0], [1], [0, 0, 1, 1], [], []>} : vector<16x32xbf16>, vector<32x64xbf16>, vector<16x64xf32> -> vector<16x64xf32>
    %c0_3 = arith.constant 0 : index
    %c0_4 = arith.constant 0 : index
    %3 = vector.load %arg3[%c0_3, %c0_4] : memref<1x64xf32, #tpu.memory_space<vmem>>, vector<1x64xf32>
    %4 = vector.broadcast %3 : vector<1x64xf32> to vector<16x64xf32>
    %5 = arith.addf %2, %4 : vector<16x64xf32>
    %cst_5 = arith.constant 0.000000e+00 : f32
    %6 = vector.broadcast %cst_5 : f32 to vector<16x64xf32>
    %7 = arith.maximumf %5, %6 : vector<16x64xf32>
    %8 = arith.truncf %7 : vector<16x64xf32> to vector<16x64xbf16>
    %c0_6 = arith.constant 0 : index
    %c0_7 = arith.constant 0 : index
    %9 = vector.load %arg4[%c0_6, %c0_7] : memref<64x64xbf16, #tpu.memory_space<vmem>>, vector<64x64xbf16>
    %cst_8 = arith.constant dense<0.000000e+00> : vector<16x64xf32>
    %10 = tpu.matmul %8, %9, %cst_8 {dimension_numbers = #tpu.dot_dimension_numbers<[1], [0], [0], [1], [0, 0, 1, 1], [], []>} : vector<16x64xbf16>, vector<64x64xbf16>, vector<16x64xf32> -> vector<16x64xf32>
    %c0_9 = arith.constant 0 : index
    %c0_10 = arith.constant 0 : index
    %11 = vector.load %arg5[%c0_9, %c0_10] : memref<1x64xf32, #tpu.memory_space<vmem>>, vector<1x64xf32>
    %12 = vector.broadcast %11 : vector<1x64xf32> to vector<16x64xf32>
    %13 = arith.addf %10, %12 : vector<16x64xf32>
    %cst_11 = arith.constant 0.000000e+00 : f32
    %14 = vector.broadcast %cst_11 : f32 to vector<16x64xf32>
    %15 = arith.maximumf %13, %14 : vector<16x64xf32>
    %16 = arith.truncf %15 : vector<16x64xf32> to vector<16x64xbf16>
    %c0_12 = arith.constant 0 : index
    %c0_13 = arith.constant 0 : index
    %17 = vector.load %arg6[%c0_12, %c0_13] : memref<64x256xbf16, #tpu.memory_space<vmem>>, vector<64x256xbf16>
    %cst_14 = arith.constant dense<0.000000e+00> : vector<16x256xf32>
    %18 = tpu.matmul %16, %17, %cst_14 {dimension_numbers = #tpu.dot_dimension_numbers<[1], [0], [0], [1], [0, 0, 1, 1], [], []>} : vector<16x64xbf16>, vector<64x256xbf16>, vector<16x256xf32> -> vector<16x256xf32>
    %c0_15 = arith.constant 0 : index
    %c0_16 = arith.constant 0 : index
    %19 = vector.load %arg7[%c0_15, %c0_16] : memref<1x256xf32, #tpu.memory_space<vmem>>, vector<1x256xf32>
    %20 = vector.broadcast %19 : vector<1x256xf32> to vector<16x256xf32>
    %21 = arith.addf %18, %20 : vector<16x256xf32>
    %22 = vector.extract_strided_slice %21 {offsets = [0, 0], sizes = [16, 8], strides = [1, 1]} : vector<16x256xf32> to vector<16x8xf32>
    %23 = vector.extract_strided_slice %21 {offsets = [0, 128], sizes = [16, 8], strides = [1, 1]} : vector<16x256xf32> to vector<16x8xf32>
    %cst_17 = arith.constant -2.000000e+01 : f32
    %cst_18 = arith.constant 2.000000e+00 : f32
    %24 = vector.broadcast %cst_17 : f32 to vector<16x8xf32>
    %25 = arith.maximumf %24, %23 : vector<16x8xf32>
    %26 = vector.broadcast %cst_18 : f32 to vector<16x8xf32>
    %27 = arith.minimumf %26, %25 : vector<16x8xf32>
    %28 = math.exp %27 : vector<16x8xf32>
    %c0_19 = arith.constant 0 : index
    %c0_20 = arith.constant 0 : index
    %29 = vector.load %arg8[%c0_19, %c0_20] : memref<16x8xf32, #tpu.memory_space<vmem>>, vector<16x8xf32>
    %30 = arith.mulf %28, %29 : vector<16x8xf32>
    %31 = arith.addf %22, %30 : vector<16x8xf32>
    %32 = math.tanh %31 : vector<16x8xf32>
    %c0_21 = arith.constant 0 : index
    %c0_22 = arith.constant 0 : index
    %33 = vector.load %arg9[%c0_21, %c0_22] : memref<16x8xf32, #tpu.memory_space<vmem>>, vector<16x8xf32>
    tpu.vector_store %arg9[%c0_21, %c0_22], %32 {strides = array<i32>} : memref<16x8xf32, #tpu.memory_space<vmem>>, vector<16x8xf32>,
    return
  }
  func.func @transform_0(%arg0: i32) -> (i32, i32) {
    %c0_i32 = arith.constant 0 : i32
    %c0_i32_0 = arith.constant 0 : i32
    return %arg0, %c0_i32 : i32, i32
  }
  func.func @transform_1(%arg0: i32) -> (i32, i32) {
    %c0_i32 = arith.constant 0 : i32
    %c0_i32_0 = arith.constant 0 : i32
    %c0_i32_1 = arith.constant 0 : i32
    return %c0_i32, %c0_i32_0 : i32, i32
  }
  func.func @transform_2(%arg0: i32) -> (i32, i32) {
    %c0_i32 = arith.constant 0 : i32
    %c0_i32_0 = arith.constant 0 : i32
    %c0_i32_1 = arith.constant 0 : i32
    return %c0_i32, %c0_i32_0 : i32, i32
  }
  func.func @transform_3(%arg0: i32) -> (i32, i32) {
    %c0_i32 = arith.constant 0 : i32
    %c0_i32_0 = arith.constant 0 : i32
    %c0_i32_1 = arith.constant 0 : i32
    return %c0_i32, %c0_i32_0 : i32, i32
  }
  func.func @transform_4(%arg0: i32) -> (i32, i32) {
    %c0_i32 = arith.constant 0 : i32
    %c0_i32_0 = arith.constant 0 : i32
    %c0_i32_1 = arith.constant 0 : i32
    return %c0_i32, %c0_i32_0 : i32, i32
  }
  func.func @transform_5(%arg0: i32) -> (i32, i32) {
    %c0_i32 = arith.constant 0 : i32
    %c0_i32_0 = arith.constant 0 : i32
    %c0_i32_1 = arith.constant 0 : i32
    return %c0_i32, %c0_i32_0 : i32, i32
  }
  func.func @transform_6(%arg0: i32) -> (i32, i32) {
    %c0_i32 = arith.constant 0 : i32
    %c0_i32_0 = arith.constant 0 : i32
    %c0_i32_1 = arith.constant 0 : i32
    return %c0_i32, %c0_i32_0 : i32, i32
  }
  func.func @transform_7(%arg0: i32) -> (i32, i32) {
    %c0_i32 = arith.constant 0 : i32
    %c0_i32_0 = arith.constant 0 : i32
    return %arg0, %c0_i32 : i32, i32
  }
  func.func @transform_8(%arg0: i32) -> (i32, i32) {
    %c0_i32 = arith.constant 0 : i32
    %c0_i32_0 = arith.constant 0 : i32
    return %arg0, %c0_i32 : i32, i32
  }
}

</mosaic_0001>

<llo_original>
// kernel: tpu_custom_call.1
$region0: #{tpu_custom_call.1}
  #allocation0 [shape = 'u32[]', space=smem, size = 0x4, offset = 0x4, fixed_abs, tag = 'smem constant byte address 0x4 - core index']
  #allocation1 [shape = 'u32[144,128]{1,0:T(1,128)}', space=vmem, size = 0x12000, scoped, tag = 'internal scratch']
  %s0 = inlined_call_operand.hbm [shape: bf16[16,32], index: 0, kind: input, shape index: {}]
  %s1 = inlined_call_operand.hbm [shape: bf16[32,64], index: 1, kind: input, shape index: {}]
  %s2 = inlined_call_operand.hbm [shape: f32[1,64], index: 2, kind: input, shape index: {}]
  %s3 = inlined_call_operand.vmem [shape: bf16[64,64], index: 3, kind: input, shape index: {}]
  %s4 = inlined_call_operand.hbm [shape: f32[1,64], index: 4, kind: input, shape index: {}]
  %s5 = inlined_call_operand.hbm [shape: bf16[64,256], index: 5, kind: input, shape index: {}]
  %s6 = inlined_call_operand.vmem [shape: f32[1,256], index: 6, kind: input, shape index: {}]
  %s7 = inlined_call_operand.vmem [shape: f32[16,8], index: 7, kind: input, shape index: {}]
  %s8 = inlined_call_operand.vmem [shape: f32[16,8], index: 8, kind: output, shape index: {}]
  %s9 = sld [smem:[#allocation0]]
  $region62: #{tpu_custom_call.1} parent=0
    _
  %s11 = ssub.s32 1, %s9
  %s12 = scalar_select 0, %s11, %s9
  $region1: #{tpu_custom_call.1} parent=0
    #allocation2 [shape = 'u8[4096]{0}', space=vmem, size = 0x1000, scoped, tag = 'input window, operand 0, single buffered']
    #allocation3 [shape = 's32[1]{0}', space=sflag, size = 0x4, scoped, tag = 'scoped memory for tpu_custom_call.1']
    #allocation4 [shape = 'u8[8192]{0}', space=vmem, size = 0x2000, scoped, tag = 'input window, operand 1, single buffered']
    #allocation5 [shape = 's32[1]{0}', space=sflag, size = 0x4, scoped, tag = 'scoped memory for tpu_custom_call.1']
    #allocation6 [shape = 'u8[512]{0}', space=vmem, size = 0x400, scoped, tag = 'input window, operand 2, single buffered']
    #allocation7 [shape = 'u8[512]{0}', space=vmem, size = 0x400, scoped, tag = 'input window, operand 4, single buffered']
    #allocation8 [shape = 's32[1]{0}', space=sflag, size = 0x4, scoped, tag = 'scoped memory for tpu_custom_call.1']
    #allocation9 [shape = 'u8[32768]{0}', space=vmem, size = 0x8000, scoped, tag = 'input window, operand 5, single buffered']
    %13 = vsyncpa [#allocation3], 0
    %14 = vsyncpa [#allocation5], 0
    %15 = vsyncpa [#allocation8], 0
    // Predicated region
    $region2: #{tpu_custom_call.1} parent=1 // pred_check
      _
    $region3: #{tpu_custom_call.1} parent=1 // pred_check_branch
      %17 = sbr.rel (0) target = $region5
    $region4: #{tpu_custom_call.1} parent=1 // pred_region
      %s19 = ssub.s32 128, 128
      %20 = vsyncadd [#allocation3], %s19
      %s21 = sshll.u32 [#allocation2], 4
      %s22 = int_to_ptr.vmem [resolvable:$true] %s21
      %27 = dma.hbm_to_vmem [thread:$0]  %s0, 128, %s22, [#allocation3], 64, 64, 4
    $region5: #{tpu_custom_call.1} parent=1 // pred_fallthru
      _
    // Predicated region
    $region6: #{tpu_custom_call.1} parent=1 // pred_check
      _
    $region7: #{tpu_custom_call.1} parent=1 // pred_check_branch
      %29 = sbr.rel (0) target = $region9
    $region8: #{tpu_custom_call.1} parent=1 // pred_region
      %s31 = ssub.s32 256, 256
      %32 = vsyncadd [#allocation5], %s31
      %s33 = sshll.u32 [#allocation4], 4
      %s34 = int_to_ptr.vmem [resolvable:$true] %s33
      %39 = dma.hbm_to_vmem [thread:$0]  %s1, 256, %s34, [#allocation5], 64, 64, 4
    $region9: #{tpu_custom_call.1} parent=1 // pred_fallthru
      _
    // Predicated region
    $region10: #{tpu_custom_call.1} parent=1 // pred_check
      _
    $region11: #{tpu_custom_call.1} parent=1 // pred_check_branch
      %41 = sbr.rel (0) target = $region13
    $region12: #{tpu_custom_call.1} parent=1 // pred_region
      %s43 = ssub.s32 16, 16
      %44 = vsyncadd [#allocation5], %s43
      %s46 = sshll.u32 [#allocation6], 4
      %s47 = int_to_ptr.vmem [resolvable:$true] %s46
      %49 = dma.hbm_to_vmem [thread:$0]  %s2, 16, %s47, [#allocation5]
    $region13: #{tpu_custom_call.1} parent=1 // pred_fallthru
      _
    // Predicated region
    $region14: #{tpu_custom_call.1} parent=1 // pred_check
      _
    $region15: #{tpu_custom_call.1} parent=1 // pred_check_branch
      %51 = sbr.rel (0) target = $region17
    $region16: #{tpu_custom_call.1} parent=1 // pred_region
      _
    $region17: #{tpu_custom_call.1} parent=1 // pred_fallthru
      _
    // Predicated region
    $region18: #{tpu_custom_call.1} parent=1 // pred_check
      _
    $region19: #{tpu_custom_call.1} parent=1 // pred_check_branch
      %53 = sbr.rel (0) target = $region21
    $region20: #{tpu_custom_call.1} parent=1 // pred_region
      %s55 = ssub.s32 16, 16
      %56 = vsyncadd [#allocation8], %s55
      %s58 = sshll.u32 [#allocation7], 4
      %s59 = int_to_ptr.vmem [resolvable:$true] %s58
      %61 = dma.hbm_to_vmem [thread:$0]  %s4, 16, %s59, [#allocation8]
    $region21: #{tpu_custom_call.1} parent=1 // pred_fallthru
      _
    // Predicated region
    $region22: #{tpu_custom_call.1} parent=1 // pred_check
      _
    $region23: #{tpu_custom_call.1} parent=1 // pred_check_branch
      %63 = sbr.rel (0) target = $region25
    $region24: #{tpu_custom_call.1} parent=1 // pred_region
      %s65 = ssub.s32 1024, 1024
      %66 = vsyncadd [#allocation8], %s65
      %s67 = sshll.u32 [#allocation9], 4
      %s68 = int_to_ptr.vmem [resolvable:$true] %s67
      %73 = dma.hbm_to_vmem [thread:$0]  %s5, 1024, %s68, [#allocation8], 128, 128, 8
    $region25: #{tpu_custom_call.1} parent=1 // pred_fallthru
      _
    // Predicated region
    $region26: #{tpu_custom_call.1} parent=1 // pred_check
      _
    $region27: #{tpu_custom_call.1} parent=1 // pred_check_branch
      %75 = sbr.rel (0) target = $region29
    $region28: #{tpu_custom_call.1} parent=1 // pred_region
      _
    $region29: #{tpu_custom_call.1} parent=1 // pred_fallthru
      _
    // Predicated region
    $region30: #{tpu_custom_call.1} parent=1 // pred_check
      _
    $region31: #{tpu_custom_call.1} parent=1 // pred_check_branch
      %77 = sbr.rel (0) target = $region33
    $region32: #{tpu_custom_call.1} parent=1 // pred_region
      _
    $region33: #{tpu_custom_call.1} parent=1 // pred_fallthru
      _
    // Predicated region
    $region34: #{tpu_custom_call.1} parent=1 // pred_check
      _
    $region35: #{tpu_custom_call.1} parent=1 // pred_check_branch
      %79 = sbr.rel (0) target = $region37
    $region36: #{tpu_custom_call.1} parent=1 // pred_region
      %80 = dma.done [#allocation3], 128
    $region37: #{tpu_custom_call.1} parent=1 // pred_fallthru
      _
    // Predicated region
    $region38: #{tpu_custom_call.1} parent=1 // pred_check
      _
    $region39: #{tpu_custom_call.1} parent=1 // pred_check_branch
      %82 = sbr.rel (0) target = $region41
    $region40: #{tpu_custom_call.1} parent=1 // pred_region
      %83 = dma.done [#allocation5], 256
    $region41: #{tpu_custom_call.1} parent=1 // pred_fallthru
      _
    // Predicated region
    $region42: #{tpu_custom_call.1} parent=1 // pred_check
      _
    $region43: #{tpu_custom_call.1} parent=1 // pred_check_branch
      %85 = sbr.rel (0) target = $region45
    $region44: #{tpu_custom_call.1} parent=1 // pred_region
      %86 = dma.done [#allocation5], 16
    $region45: #{tpu_custom_call.1} parent=1 // pred_fallthru
      _
    // Predicated region
    $region46: #{tpu_custom_call.1} parent=1 // pred_check
      _
    $region47: #{tpu_custom_call.1} parent=1 // pred_check_branch
      %88 = sbr.rel (0) target = $region49
    $region48: #{tpu_custom_call.1} parent=1 // pred_region
      %89 = dma.done [#allocation8], 16
    $region49: #{tpu_custom_call.1} parent=1 // pred_fallthru
      _
    // Predicated region
    $region50: #{tpu_custom_call.1} parent=1 // pred_check
      _
    $region51: #{tpu_custom_call.1} parent=1 // pred_check_branch
      %91 = sbr.rel (0) target = $region53
    $region52: #{tpu_custom_call.1} parent=1 // pred_region
      %92 = dma.done [#allocation8], 1024
    $region53: #{tpu_custom_call.1} parent=1 // pred_fallthru
      _
    %v94 = vld [vmem:[#allocation2] sm:$0xf]
    %v95 = vld [vmem:[#allocation2 + $0x4] sm:$0xf]
    %v96 = vld [vmem:[#allocation4] sm:$0xf]
    %v97 = vld [vmem:[#allocation4 + $0x4] sm:$0xf]
    %v98 = vld [vmem:[#allocation4 + $0x8] sm:$0xf]
    %v99 = vld [vmem:[#allocation4 + $0xc] sm:$0xf]
    %v100 = vld [vmem:[#allocation6] sm:$0x1]
    %v102 = vlaneseq
    %v103 = vshrl.u32 %v102, 7
    %v104 = vsub.s32 0, %v103
    %v105 = vrot.slane %v100, %v104
    %v109 = vunpack.c.l.b16 %v94
    %v110 = vunpack.c.l.b16 %v95
    %v111 = vpack.c.b16 %v110, %v109
    %v116 = vunpack.c.l.b16 %v96
    %v117 = vunpack.c.l.b16 %v97
    %v118 = vunpack.c.l.b16 %v98
    %v119 = vunpack.c.l.b16 %v99
    %v120 = vpack.c.b16 %v117, %v116
    %v121 = vpack.c.b16 %v119, %v118
    %vm124 = vcmask 261120
    %v126 = vsel %vm124, %v111, 0
    %128 = vmatprep.subr.bf16.mxu0 0
    %129 = vmatpush1.bf16.msra.mxu0 %v120
    %130 = vmatprep.subr.bf16.mxu0 0
    %131 = vmatpush1.bf16.msra.mxu0 %v121
    %132 = vmatprep.subr.bf16.mxu0 0
    %133 = vmatpush1.bf16.msra.mxu0 0
    %134 = vmatprep.subr.bf16.mxu0 0
    %135 = vmatpush1.bf16.msra.mxu0 0
    %136 = vmatprep.subr.bf16.mxu0 0
    %137 = vmatpush1.bf16.msra.mxu0 0
    %138 = vmatprep.subr.bf16.mxu0 0
    %139 = vmatpush1.bf16.msra.mxu0 0
    %140 = vmatprep.subr.bf16.mxu0 0
    %141 = vmatpush1.bf16.msra.mxu0 0
    %142 = vmatprep.subr.bf16.mxu0 0
    %143 = vmatpush1.bf16.msra.mxu0 0
    %144 = vmatprep.subr.bf16.mxu0 0
    %145 = vmatpush1.bf16.msra.mxu0 0
    %146 = vmatprep.subr.bf16.mxu0 0
    %147 = vmatpush1.bf16.msra.mxu0 0
    %148 = vmatprep.subr.bf16.mxu0 0
    %149 = vmatpush1.bf16.msra.mxu0 0
    %150 = vmatprep.subr.bf16.mxu0 0
    %151 = vmatpush1.bf16.msra.mxu0 0
    %152 = vmatprep.subr.bf16.mxu0 0
    %153 = vmatpush1.bf16.msra.mxu0 0
    %154 = vmatprep.subr.bf16.mxu0 0
    %155 = vmatpush1.bf16.msra.mxu0 0
    %156 = vmatprep.subr.bf16.mxu0 0
    %157 = vmatpush1.bf16.msra.mxu0 0
    %158 = vmatprep.subr.bf16.mxu0 0
    %159 = vmatpush1.bf16.msra.mxu0 0
    %160 = vmatprep.mubr.bf16.mxu0 0
    %161 = vmatmul.mubr.bf16.gmra.mrb[0].mxu0 %v126
    %v162 = vpop.f32.mrb[0].mxu0
    %v163 = vadd.f32 %v105, %v162
    %v164 = vpop.f32.mrb[0].mxu0
    %v165 = vpop.f32.mrb[0].mxu0
    %v166 = vadd.f32 %v105, %v165
    %v167 = vpop.f32.mrb[0].mxu0
    %168 = vdwg.mxu0
    %v169 = vmax.f32 %v163, 0.0
    %v170 = vmax.f32 %v166, 0.0
    %v171 = vpack.c.bf16 %v170, %v169
    %v172 = vld [vmem:[%s3] sm:$0xf]
    %v173 = vld [vmem:[%s3 + $0x4] sm:$0xf]
    %v174 = vld [vmem:[%s3 + $0x8] sm:$0xf]
    %v175 = vld [vmem:[%s3 + $0xc] sm:$0xf]
    %v176 = vld [vmem:[%s3 + $0x10] sm:$0xf]
    %v177 = vld [vmem:[%s3 + $0x14] sm:$0xf]
    %v178 = vld [vmem:[%s3 + $0x18] sm:$0xf]
    %v179 = vld [vmem:[%s3 + $0x1c] sm:$0xf]
    %v180 = vld [vmem:[#allocation7] sm:$0x1]
    %v182 = vlaneseq
    %v183 = vshrl.u32 %v182, 7
    %v184 = vsub.s32 0, %v183
    %v185 = vrot.slane %v180, %v184
    %v195 = vunpack.c.l.b16 %v172
    %v196 = vunpack.c.l.b16 %v173
    %v197 = vunpack.c.l.b16 %v174
    %v198 = vunpack.c.l.b16 %v175
    %v199 = vunpack.c.l.b16 %v176
    %v200 = vunpack.c.l.b16 %v177
    %v201 = vunpack.c.l.b16 %v178
    %v202 = vunpack.c.l.b16 %v179
    %v203 = vpack.c.b16 %v196, %v195
    %v204 = vpack.c.b16 %v198, %v197
    %v205 = vpack.c.b16 %v200, %v199
    %v206 = vpack.c.b16 %v202, %v201
    %vm211 = vcmask 523264
    %v213 = vsel %vm211, %v171, 0
    %215 = vmatprep.subr.bf16.mxu0 0
    %216 = vmatpush1.bf16.msra.mxu0 %v203
    %217 = vmatprep.subr.bf16.mxu0 0
    %218 = vmatpush1.bf16.msra.mxu0 %v204
    %219 = vmatprep.subr.bf16.mxu0 0
    %220 = vmatpush1.bf16.msra.mxu0 %v205
    %221 = vmatprep.subr.bf16.mxu0 0
    %222 = vmatpush1.bf16.msra.mxu0 %v206
    %223 = vmatprep.subr.bf16.mxu0 0
    %224 = vmatpush1.bf16.msra.mxu0 0
    %225 = vmatprep.subr.bf16.mxu0 0
    %226 = vmatpush1.bf16.msra.mxu0 0
    %227 = vmatprep.subr.bf16.mxu0 0
    %228 = vmatpush1.bf16.msra.mxu0 0
    %229 = vmatprep.subr.bf16.mxu0 0
    %230 = vmatpush1.bf16.msra.mxu0 0
    %231 = vmatprep.subr.bf16.mxu0 0
    %232 = vmatpush1.bf16.msra.mxu0 0
    %233 = vmatprep.subr.bf16.mxu0 0
    %234 = vmatpush1.bf16.msra.mxu0 0
    %235 = vmatprep.subr.bf16.mxu0 0
    %236 = vmatpush1.bf16.msra.mxu0 0
    %237 = vmatprep.subr.bf16.mxu0 0
    %238 = vmatpush1.bf16.msra.mxu0 0
    %239 = vmatprep.subr.bf16.mxu0 0
    %240 = vmatpush1.bf16.msra.mxu0 0
    %241 = vmatprep.subr.bf16.mxu0 0
    %242 = vmatpush1.bf16.msra.mxu0 0
    %243 = vmatprep.subr.bf16.mxu0 0
    %244 = vmatpush1.bf16.msra.mxu0 0
    %245 = vmatprep.subr.bf16.mxu0 0
    %246 = vmatpush1.bf16.msra.mxu0 0
    %247 = vmatprep.mubr.bf16.mxu0 0
    %248 = vmatmul.mubr.bf16.gmra.mrb[0].mxu0 %v213
    %v249 = vpop.f32.mrb[0].mxu0
    %v250 = vadd.f32 %v185, %v249
    %v251 = vpop.f32.mrb[0].mxu0
    %v252 = vpop.f32.mrb[0].mxu0
    %v253 = vadd.f32 %v185, %v252
    %v254 = vpop.f32.mrb[0].mxu0
    %255 = vdwg.mxu0
    %v256 = vmax.f32 %v250, 0.0
    %v257 = vmax.f32 %v253, 0.0
    %v258 = vpack.c.bf16 %v257, %v256
    %v259 = vld [vmem:[#allocation9] sm:$0xff]
    %v260 = vld [vmem:[#allocation9 + $0x8] sm:$0xff]
    %v261 = vld [vmem:[#allocation9 + $0x10] sm:$0xff]
    %v262 = vld [vmem:[#allocation9 + $0x18] sm:$0xff]
    %v263 = vld [vmem:[#allocation9 + $0x20] sm:$0xff]
    %v264 = vld [vmem:[#allocation9 + $0x28] sm:$0xff]
    %v265 = vld [vmem:[#allocation9 + $0x30] sm:$0xff]
    %v266 = vld [vmem:[#allocation9 + $0x38] sm:$0xff]
    %v267 = vld [vmem:[%s6] sm:$0x3]
    %v269 = vlaneseq
    %v270 = vshrl.u32 %v269, 7
    %v271 = vsub.s32 0, %v270
    %v272 = vrot.slane %v267, %v271
    %v273 = vlaneseq
    %v274 = vshrl.u32 %v273, 7
    %v275 = vsub.s32 1, %v274
    %v276 = vrot.slane %v267, %v275
    %v287 = vunpack.c.l.b16 %v259
    %v288 = vunpack.c.h.b16 %v259
    %v289 = vunpack.c.l.b16 %v260
    %v290 = vunpack.c.h.b16 %v260
    %v291 = vunpack.c.l.b16 %v261
    %v292 = vunpack.c.h.b16 %v261
    %v293 = vunpack.c.l.b16 %v262
    %v294 = vunpack.c.h.b16 %v262
    %v295 = vunpack.c.l.b16 %v263
    %v296 = vunpack.c.h.b16 %v263
    %v297 = vunpack.c.l.b16 %v264
    %v298 = vunpack.c.h.b16 %v264
    %v299 = vunpack.c.l.b16 %v265
    %v300 = vunpack.c.h.b16 %v265
    %v301 = vunpack.c.l.b16 %v266
    %v302 = vunpack.c.h.b16 %v266
    %v303 = vpack.c.b16 %v289, %v287
    %v304 = vpack.c.b16 %v290, %v288
    %v305 = vpack.c.b16 %v293, %v291
    %v306 = vpack.c.b16 %v294, %v292
    %v307 = vpack.c.b16 %v297, %v295
    %v308 = vpack.c.b16 %v298, %v296
    %v309 = vpack.c.b16 %v301, %v299
    %v310 = vpack.c.b16 %v302, %v300
    %v320 = vsel %vm211, %v258, 0
    %322 = vmatprep.subr.bf16.mxu0 %v304
    %323 = vmatpush1.bf16.msra.mxu0 %v303
    %324 = vmatprep.subr.bf16.mxu0 %v306
    %325 = vmatpush1.bf16.msra.mxu0 %v305
    %326 = vmatprep.subr.bf16.mxu0 %v308
    %327 = vmatpush1.bf16.msra.mxu0 %v307
    %328 = vmatprep.subr.bf16.mxu0 %v310
    %329 = vmatpush1.bf16.msra.mxu0 %v309
    %330 = vmatprep.subr.bf16.mxu0 0
    %331 = vmatpush1.bf16.msra.mxu0 0
    %332 = vmatprep.subr.bf16.mxu0 0
    %333 = vmatpush1.bf16.msra.mxu0 0
    %334 = vmatprep.subr.bf16.mxu0 0
    %335 = vmatpush1.bf16.msra.mxu0 0
    %336 = vmatprep.subr.bf16.mxu0 0
    %337 = vmatpush1.bf16.msra.mxu0 0
    %338 = vmatprep.subr.bf16.mxu0 0
    %339 = vmatpush1.bf16.msra.mxu0 0
    %340 = vmatprep.subr.bf16.mxu0 0
    %341 = vmatpush1.bf16.msra.mxu0 0
    %342 = vmatprep.subr.bf16.mxu0 0
    %343 = vmatpush1.bf16.msra.mxu0 0
    %344 = vmatprep.subr.bf16.mxu0 0
    %345 = vmatpush1.bf16.msra.mxu0 0
    %346 = vmatprep.subr.bf16.mxu0 0
    %347 = vmatpush1.bf16.msra.mxu0 0
    %348 = vmatprep.subr.bf16.mxu0 0
    %349 = vmatpush1.bf16.msra.mxu0 0
    %350 = vmatprep.subr.bf16.mxu0 0
    %351 = vmatpush1.bf16.msra.mxu0 0
    %352 = vmatprep.subr.bf16.mxu0 0
    %353 = vmatpush1.bf16.msra.mxu0 0
    %354 = vmatprep.mubr.bf16.mxu0 0
    %355 = vmatmul.mubr.bf16.gmra.mrb[0].mxu0 %v320
    %v356 = vpop.f32.mrb[0].mxu0
    %v357 = vadd.f32 %v272, %v356
    %v358 = vpop.f32.mrb[0].mxu0
    %v359 = vadd.f32 %v276, %v358
    %v360 = vpop.f32.mrb[0].mxu0
    %v361 = vadd.f32 %v272, %v360
    %v362 = vpop.f32.mrb[0].mxu0
    %v363 = vadd.f32 %v276, %v362
    %364 = vdwg.mxu0
    %v365 = vmax.f32 %v359, -20.0
    %v366 = vmax.f32 %v363, -20.0
    %v367 = vmin.f32 %v365, 2.0
    %v368 = vmin.f32 %v366, 2.0
    %v369 = vmul.f32 %v367, 1.442695
    %v370 = vpow.pop %v369
    %v371 = vmul.f32 %v368, 1.442695
    %v372 = vpow.pop %v371
    %v373 = vld [vmem:[%s7] sm:$0xff]
    %v374 = vld [vmem:[%s7 + $0x8] sm:$0xff]
    %v375 = vmul.f32 %v370, %v373
    %v376 = vmul.f32 %v372, %v374
    %v377 = vadd.f32 %v357, %v375
    %v378 = vadd.f32 %v361, %v376
    %v379 = vtanh.pop %v377
    %v380 = vtanh.pop %v378
    %vm381 = vcmask 64512
    %382 = vst.msk [vmem:[%s8] sm:$0xff] %vm381, %v379
    %383 = vst.msk [vmem:[%s8 + $0x8] sm:$0xff] %vm381, %v380
    // Predicated region
    $region54: #{tpu_custom_call.1} parent=1 // pred_check
      _
    $region55: #{tpu_custom_call.1} parent=1 // pred_check_branch
      %385 = sbr.rel (0) target = $region57
    $region56: #{tpu_custom_call.1} parent=1 // pred_region
      _
    $region57: #{tpu_custom_call.1} parent=1 // pred_fallthru
      _
    // Predicated region
    $region58: #{tpu_custom_call.1} parent=1 // pred_check
      _
    $region59: #{tpu_custom_call.1} parent=1 // pred_check_branch
      %387 = sbr.rel (0) target = $region61
    $region60: #{tpu_custom_call.1} parent=1 // pred_region
      _
    $region61: #{tpu_custom_call.1} parent=1 // pred_fallthru
      _
    %388 = vsyncpa [#allocation3], 1
    %389 = vsyncpa [#allocation5], 1
    %390 = vsyncpa [#allocation8], 1

</llo_original>
